<compile_context>
chip_gen: v7x
topology: tpu7x:2x2x1
jax: 0.10.0
libtpu: 0.0.40
codegen_flags: <defaults>
</compile_context>

<pallas_src>
import functools
import math

import jax
import jax.numpy as jnp
from jax.experimental import pallas as pl
from jax.experimental.pallas import tpu as pltpu


def make_pe_table(length, d_model, positional_scaler=1.0):
    """PositionalEncoding1D buffer P[:length] -> (length, d_model) float32."""
    # NOTE: assumes even d_model (same assumption as the torch original).
    position = jnp.arange(length, dtype=jnp.float32)[:, None] * positional_scaler
    div_term = jnp.exp(
        jnp.arange(0, d_model, 2, dtype=jnp.float32) * (-math.log(10000.0) / d_model)
    )
    ang = position * div_term                       # (length, d_model//2)
    pe = jnp.zeros((length, d_model), jnp.float32)
    pe = pe.at[:, 0::2].set(jnp.sin(ang))
    pe = pe.at[:, 1::2].set(jnp.cos(ang))
    return pe


# ---------------------------------------------------------------------------
# Kernels
# ---------------------------------------------------------------------------

def _a2dpe_fused_kernel(alpha_p_ref, beta_p_ref, x_ref, ph_ref, pw_ref, o_ref):
    """Fused path: one batch element per block (mean + PEScaling + add)."""
    # alpha_p_ref / beta_p_ref : (4,) f32 SMEM -> [w1, b1, w2, b2] of PEScaling
    # x_ref  : (1, H, W*D) VMEM  (lane-dense raw reinterpretation of NCHW x[b])
    # ph_ref : (H, W*D) VMEM     P[h] replicated across W (scale-agnostic)
    # pw_ref : (1, W*D) VMEM     P[:W] flattened
    xb = x_ref[0].astype(jnp.float32)               # (H, W*D)
    m = jnp.mean(xb)                                # mean over all non-batch dims

    def pe_scaling(p_ref):
        h = jnp.maximum(p_ref[0] * m + p_ref[1], 0.0)    # ReLU(Linear(1,1))
        return jax.nn.sigmoid(p_ref[2] * h + p_ref[3])   # Sigmoid(Linear(1,1))

    alpha = pe_scaling(alpha_p_ref)                 # scalar
    beta = pe_scaling(beta_p_ref)                   # scalar
    pos = alpha * ph_ref[...] + beta * pw_ref[...]  # (H, W*D), pw broadcast over rows
    o_ref[0] = (xb + pos).astype(o_ref.dtype)


def _a2dpe_mean_kernel(x_ref, acc_ref):
    """Per-batch sum over H-tiles; acc block is resident across the t axis."""
    # x_ref  : (1, tile_h, W*D) VMEM
    # acc_ref: (1, 8, 128) f32 output block (same block index for all t -> accumulator)
    @pl.when(pl.program_id(1) == 0)
    def _():
        acc_ref[...] = jnp.zeros_like(acc_ref)
    acc_ref[...] += jnp.sum(x_ref[...].astype(jnp.float32))


def _a2dpe_add_kernel(alpha_ref, beta_ref, x_ref, ph_ref, pw_ref, o_ref):
    """Streaming add, tiled over H, lane-dense (W*D) last dim."""
    # alpha_ref / beta_ref : (B,) f32 SMEM, indexed by the batch grid position
    # x_ref  : (1, tile_h, W*D) VMEM
    # ph_ref : (tile_h, W*D) VMEM  (follows the h-tile, outer grid axis)
    # pw_ref : (1, W*D) VMEM       (constant block index -> fetched once)
    b = pl.program_id(1)
    alpha = alpha_ref[b]
    beta = beta_ref[b]
    pos = alpha * ph_ref[...] + beta * pw_ref[...]          # (tile_h, W*D)
    o_ref[0] = (x_ref[0].astype(jnp.float32) + pos).astype(o_ref.dtype)


# ---------------------------------------------------------------------------
# Wrapper helpers
# ---------------------------------------------------------------------------

def _vmem_budget_bytes():
    """Usable VMEM budget with headroom (generation aware: 64 MiB v7x, 128 MiB v5e/v6e)."""
    cap = 64 * 1024 * 1024
    try:
        cap = int(pltpu.get_tpu_info().vmem_capacity_bytes)
    except Exception:
        pass
    return max(16 * 1024 * 1024, (cap * 3) // 4)


def _pick_tile_h(H, row_bytes, block_bytes_target):
    """Largest legal h-tile (multiple of 8 dividing H, or H itself) within budget."""
    candidates = [H]
    if H % 8 == 0:
        candidates += [th for th in range(8, H, 8) if H % th == 0]
    fitting = [th for th in candidates if th * row_bytes <= block_bytes_target]
    if fitting:
        return max(fitting)
    return min(candidates)   # still correct, just tighter on VMEM


def _pe_scaling_host(params, E):
    """PEScaling MLP on per-batch scalars (8 flops per batch element)."""
    w1, b1, w2, b2 = params[0], params[1], params[2], params[3]
    h = jnp.maximum(w1 * E + b1, 0.0)
    return jax.nn.sigmoid(w2 * h + b2).astype(jnp.float32)


@functools.partial(jax.jit, static_argnames=("positional_scaler", "max_block_bytes"))
def a2dpe_forward(x, alpha_params, beta_params, positional_scaler=1.0,
                  max_block_bytes=None):
    """x: (B, C, H, W) with C == d_model.  Returns same shape/dtype."""
    B, C, H, W = x.shape
    d_model = C
    WD = W * d_model
    itemsize = jnp.dtype(x.dtype).itemsize

    budget = _vmem_budget_bytes()
    block_target = min(budget // 8, 8 * 1024 * 1024)
    if max_block_bytes is not None:
        block_target = int(max_block_bytes)

    # Pure row-major reinterpretation of NCHW (matches torch's raw reshape).
    x_flat = x.reshape(B, H, WD)

    pe = make_pe_table(max(H, W), d_model, positional_scaler)
    # Lane-dense POS pieces: ph_tiled[h, w*D + d] = P[h, d]; pw_flat[0, w*D + d] = P[w, d].
    ph_tiled = jnp.broadcast_to(pe[:H, None, :], (H, W, d_model)).reshape(H, WD)
    pw_flat = pe[:W].reshape(1, WD)

    cparams = lambda dims: pltpu.CompilerParams(
        dimension_semantics=dims, vmem_limit_bytes=budget)

    if H * WD * itemsize <= block_target:
        # ---- Fused path: single HBM pass over x (mean + PEScaling + add in-kernel).
        out = pl.pallas_call(
            _a2dpe_fused_kernel,
            grid=(B,),
            in_specs=[
                pl.BlockSpec(memory_space=pltpu.MemorySpace.SMEM),       # alpha params
                pl.BlockSpec(memory_space=pltpu.MemorySpace.SMEM),       # beta params
                pl.BlockSpec((1, H, WD), lambda b: (b, 0, 0)),           # x[b]
                pl.BlockSpec((H, WD), lambda b: (0, 0)),                 # ph (resident)
                pl.BlockSpec((1, WD), lambda b: (0, 0)),                 # pw (resident)
            ],
            out_specs=pl.BlockSpec((1, H, WD), lambda b: (b, 0, 0)),
            out_shape=jax.ShapeDtypeStruct((B, H, WD), x.dtype),
            compiler_params=cparams(("parallel",)),
        )(alpha_params, beta_params, x_flat, ph_tiled, pw_flat)
    else:
        # ---- Tiled path: decouple the per-batch mean so the add streams freely.
        tile_h = _pick_tile_h(H, WD * itemsize, block_target)
        num_th = H // tile_h

        # Pass 1: per-batch sum via accumulator-output pattern (reduction axis last).
        acc = pl.pallas_call(
            _a2dpe_mean_kernel,
            grid=(B, num_th),
            in_specs=[pl.BlockSpec((1, tile_h, WD), lambda b, t: (b, t, 0))],
            out_specs=pl.BlockSpec((1, 8, 128), lambda b, t: (b, 0, 0)),
            out_shape=jax.ShapeDtypeStruct((B, 8, 128), jnp.float32),
            compiler_params=cparams(("parallel", "arbitrary")),
        )(x_flat)
        E = acc[:, 0, 0] / jnp.float32(H * WD)                 # (B,) per-batch mean

        # Tiny PEScaling MLPs on (B,) scalars (hoisted out of the kernel).
        alpha = _pe_scaling_host(alpha_params, E)              # (B,)
        beta = _pe_scaling_host(beta_params, E)                # (B,)

        # Pass 2: streaming add. Grid is (h_tiles, batch) so ph is only
        # re-DMA'd when the h-tile changes; pw never changes.
        out = pl.pallas_call(
            _a2dpe_add_kernel,
            grid=(num_th, B),
            in_specs=[
                pl.BlockSpec(memory_space=pltpu.MemorySpace.SMEM),       # alpha (B,)
                pl.BlockSpec(memory_space=pltpu.MemorySpace.SMEM),       # beta (B,)
                pl.BlockSpec((1, tile_h, WD), lambda t, b: (b, t, 0)),   # x tile
                pl.BlockSpec((tile_h, WD), lambda t, b: (t, 0)),         # ph tile
                pl.BlockSpec((1, WD), lambda t, b: (0, 0)),              # pw (resident)
            ],
            out_specs=pl.BlockSpec((1, tile_h, WD), lambda t, b: (b, t, 0)),
            out_shape=jax.ShapeDtypeStruct((B, H, WD), x.dtype),
            compiler_params=cparams(("parallel", "parallel")),
        )(alpha, beta, x_flat, ph_tiled, pw_flat)

    return out.reshape(B, C, H, W)


def a2dpe_reference(x, alpha_params, beta_params, positional_scaler=1.0):
    """Pure-JAX transliteration of the PyTorch forward (for verification)."""
    B, C, H, W = x.shape
    d_model = C
    pe = make_pe_table(max(H, W), d_model, positional_scaler)

    E = x.mean(axis=(1, 2, 3))[:, None]             # (B, 1)

    def pe_scaling(params):
        w1, b1, w2, b2 = params
        h = jnp.maximum(w1 * E + b1, 0.0)
        return jax.nn.sigmoid(w2 * h + b2)[:, :, None]   # (B, 1, 1)

    alpha = pe_scaling(alpha_params)
    beta = pe_scaling(beta_params)

    Ph = alpha * pe[None, :H]                       # (B, H, D)
    Pw = beta * pe[None, :W]                        # (B, W, D)
    Ph = jnp.repeat(Ph, W, axis=1)                  # torch.repeat_interleave(.., W, dim=1)
    Pw = jnp.tile(Pw, (1, H, 1))                    # .repeat(1, H, 1)
    POS = (Ph + Pw).reshape(x.shape)                # raw row-major reshape, as in torch
    return POS + x


if __name__ == "__main__":
    # Small, deterministic example: B=2, d_model=C=32, H=16, W=8  (W*D = 256 lanes).
    B, D, H, W = 2, 32, 16, 8
    key = jax.random.PRNGKey(0)
    kx, ka, kb = jax.random.split(key, 3)

    x = jax.random.normal(kx, (B, D, H, W), dtype=jnp.float32)
    # PEScaling params [w1, b1, w2, b2] for alpha_fc and beta_fc.
    alpha_params = jax.random.normal(ka, (4,), dtype=jnp.float32)
    beta_params = jax.random.normal(kb, (4,), dtype=jnp.float32)

    ref = a2dpe_reference(x, alpha_params, beta_params, positional_scaler=1.0)

    # Path 1: fused kernel (one batch element fits the per-block VMEM budget).
    out_fused = jax.block_until_ready(
        a2dpe_forward(x, alpha_params, beta_params, positional_scaler=1.0))
    assert out_fused.shape == x.shape and out_fused.dtype == x.dtype
    assert jnp.allclose(out_fused, ref, atol=1e-5, rtol=1e-5), "fused path mismatch"

    # Path 2: force the tiled + decoupled-mean path (tiny per-block budget ->
    # tile_h = 8, two h-tiles) to exercise the scalable code path.
    out_tiled = jax.block_until_ready(
        a2dpe_forward(x, alpha_params, beta_params, positional_scaler=1.0,
                      max_block_bytes=8 * W * D * 4))
    assert out_tiled.shape == x.shape and out_tiled.dtype == x.dtype
    assert jnp.allclose(out_tiled, ref, atol=1e-5, rtol=1e-5), "tiled path mismatch"

    print("KERNEL_OK")
</pallas_src>

<mosaic_0001>
module attributes {stable_mosaic.version = 11 : i64} {
  func.func @_a2dpe_fused_kernel(%arg0: i32, %arg1: memref<4xf32, #tpu.memory_space<smem>>, %arg2: memref<4xf32, #tpu.memory_space<smem>>, %arg3: memref<1x16x256xf32, #tpu.memory_space<vmem>>, %arg4: memref<16x256xf32, #tpu.memory_space<vmem>>, %arg5: memref<1x256xf32, #tpu.memory_space<vmem>>, %arg6: memref<1x16x256xf32, #tpu.memory_space<vmem>>) attributes {dimension_semantics = [#tpu.dimension_semantics<parallel>], iteration_bounds = array<i64: 2>, scalar_prefetch = 0 : i64, scratch_operands = 0 : i64, tpu.core_type = #tpu.core_type<tc>, window_params = [{transform_indices = @transform_0, window_bounds = array<i64: 4>}, {transform_indices = @transform_1, window_bounds = array<i64: 4>}, {transform_indices = @transform_2, window_bounds = array<i64: 1, 16, 256>}, {pipeline_mode = #tpu.pipeline_mode<synchronous>, transform_indices = @transform_3, window_bounds = array<i64: 16, 256>}, {pipeline_mode = #tpu.pipeline_mode<synchronous>, transform_indices = @transform_4, window_bounds = array<i64: 1, 256>}, {transform_indices = @transform_5, window_bounds = array<i64: 1, 16, 256>}]} {
    %c0 = arith.constant 0 : index
    %c0_0 = arith.constant 0 : index
    %c0_1 = arith.constant 0 : index
    %0 = vector.load %arg3[%c0, %c0_0, %c0_1] : memref<1x16x256xf32, #tpu.memory_space<vmem>>, vector<1x16x256xf32>
    %1 = vector.shape_cast %0 : vector<1x16x256xf32> to vector<16x256xf32>
    %2 = vector.shape_cast %1 : vector<16x256xf32> to vector<1x16x256xf32>
    %cst = arith.constant dense<0.000000e+00> : vector<1xf32>
    %3 = vector.multi_reduction <add>, %2, %cst [1, 2] : vector<1x16x256xf32> to vector<1xf32>
    %4 = vector.shape_cast %3 : vector<1xf32> to vector<1x1x1xf32>
    %5 = vector.extract %4[0, 0, 0] : f32 from vector<1x1x1xf32>
    %cst_2 = arith.constant 4.096000e+03 : f32
    %6 = arith.divf %5, %cst_2 : f32
    %c0_3 = arith.constant 0 : index
    %7 = memref.load %arg1[%c0_3] : memref<4xf32, #tpu.memory_space<smem>>
    %8 = arith.mulf %7, %6 : f32
    %c1 = arith.constant 1 : index
    %9 = memref.load %arg1[%c1] : memref<4xf32, #tpu.memory_space<smem>>
    %10 = arith.addf %8, %9 : f32
    %cst_4 = arith.constant 0.000000e+00 : f32
    %11 = arith.maximumf %10, %cst_4 : f32
    %c2 = arith.constant 2 : index
    %12 = memref.load %arg1[%c2] : memref<4xf32, #tpu.memory_space<smem>>
    %13 = arith.mulf %12, %11 : f32
    %c3 = arith.constant 3 : index
    %14 = memref.load %arg1[%c3] : memref<4xf32, #tpu.memory_space<smem>>
    %15 = arith.addf %13, %14 : f32
    %16 = arith.negf %15 : f32
    %17 = math.exp %16 : f32
    %cst_5 = arith.constant 1.000000e+00 : f32
    %18 = arith.addf %cst_5, %17 : f32
    %19 = arith.divf %cst_5, %18 : f32
    %c0_6 = arith.constant 0 : index
    %20 = memref.load %arg2[%c0_6] : memref<4xf32, #tpu.memory_space<smem>>
    %21 = arith.mulf %20, %6 : f32
    %c1_7 = arith.constant 1 : index
    %22 = memref.load %arg2[%c1_7] : memref<4xf32, #tpu.memory_space<smem>>
    %23 = arith.addf %21, %22 : f32
    %cst_8 = arith.constant 0.000000e+00 : f32
    %24 = arith.maximumf %23, %cst_8 : f32
    %c2_9 = arith.constant 2 : index
    %25 = memref.load %arg2[%c2_9] : memref<4xf32, #tpu.memory_space<smem>>
    %26 = arith.mulf %25, %24 : f32
    %c3_10 = arith.constant 3 : index
    %27 = memref.load %arg2[%c3_10] : memref<4xf32, #tpu.memory_space<smem>>
    %28 = arith.addf %26, %27 : f32
    %29 = arith.negf %28 : f32
    %30 = math.exp %29 : f32
    %cst_11 = arith.constant 1.000000e+00 : f32
    %31 = arith.addf %cst_11, %30 : f32
    %32 = arith.divf %cst_11, %31 : f32
    %c0_12 = arith.constant 0 : index
    %c0_13 = arith.constant 0 : index
    %33 = vector.load %arg4[%c0_12, %c0_13] : memref<16x256xf32, #tpu.memory_space<vmem>>, vector<16x256xf32>
    %34 = vector.broadcast %19 : f32 to vector<16x256xf32>
    %35 = arith.mulf %34, %33 : vector<16x256xf32>
    %c0_14 = arith.constant 0 : index
    %c0_15 = arith.constant 0 : index
    %36 = vector.load %arg5[%c0_14, %c0_15] : memref<1x256xf32, #tpu.memory_space<vmem>>, vector<1x256xf32>
    %37 = vector.broadcast %32 : f32 to vector<1x256xf32>
    %38 = arith.mulf %37, %36 : vector<1x256xf32>
    %39 = vector.broadcast %38 : vector<1x256xf32> to vector<16x256xf32>
    %40 = arith.addf %35, %39 : vector<16x256xf32>
    %41 = arith.addf %1, %40 : vector<16x256xf32>
    %c0_16 = arith.constant 0 : index
    %c0_17 = arith.constant 0 : index
    %c0_18 = arith.constant 0 : index
    %42 = vector.load %arg6[%c0_16, %c0_17, %c0_18] : memref<1x16x256xf32, #tpu.memory_space<vmem>>, vector<1x16x256xf32>
    %43 = vector.shape_cast %42 : vector<1x16x256xf32> to vector<16x256xf32>
    %44 = vector.shape_cast %41 : vector<16x256xf32> to vector<1x16x256xf32>
    tpu.vector_store %arg6[%c0_16, %c0_17, %c0_18], %44 {strides = array<i32>} : memref<1x16x256xf32, #tpu.memory_space<vmem>>, vector<1x16x256xf32>,
    return
  }
  func.func @transform_0(%arg0: i32) -> i32 {
    %c0_i32 = arith.constant 0 : i32
    %c0_i32_0 = arith.constant 0 : i32
    return %c0_i32 : i32
  }
  func.func @transform_1(%arg0: i32) -> i32 {
    %c0_i32 = arith.constant 0 : i32
    %c0_i32_0 = arith.constant 0 : i32
    return %c0_i32 : i32
  }
  func.func @transform_2(%arg0: i32) -> (i32, i32, i32) {
    %c0_i32 = arith.constant 0 : i32
    %c0_i32_0 = arith.constant 0 : i32
    %c0_i32_1 = arith.constant 0 : i32
    return %arg0, %c0_i32, %c0_i32_0 : i32, i32, i32
  }
  func.func @transform_3(%arg0: i32) -> (i32, i32) {
    %c0_i32 = arith.constant 0 : i32
    %c0_i32_0 = arith.constant 0 : i32
    %c0_i32_1 = arith.constant 0 : i32
    return %c0_i32, %c0_i32_0 : i32, i32
  }
  func.func @transform_4(%arg0: i32) -> (i32, i32) {
    %c0_i32 = arith.constant 0 : i32
    %c0_i32_0 = arith.constant 0 : i32
    %c0_i32_1 = arith.constant 0 : i32
    return %c0_i32, %c0_i32_0 : i32, i32
  }
  func.func @transform_5(%arg0: i32) -> (i32, i32, i32) {
    %c0_i32 = arith.constant 0 : i32
    %c0_i32_0 = arith.constant 0 : i32
    %c0_i32_1 = arith.constant 0 : i32
    return %arg0, %c0_i32, %c0_i32_0 : i32, i32, i32
  }
}

</mosaic_0001>

<llo_original>
// kernel: a2dpe_forward.1
$region0: #{a2dpe_forward.1}
  #allocation0 [shape = 'u32[]', space=smem, size = 0x4, offset = 0x4, fixed_abs, tag = 'smem constant byte address 0x4 - core index']
  #allocation1 [shape = 'u32[144,128]{1,0:T(1,128)}', space=vmem, size = 0x12000, scoped, tag = 'internal scratch']
  %s0 = inlined_call_operand.vmem [shape: f32[4], index: 0, kind: input, shape index: {}]
  %s1 = inlined_call_operand.vmem [shape: f32[4], index: 1, kind: input, shape index: {}]
  %s2 = inlined_call_operand.vmem [shape: f32[2,16,256], index: 2, kind: input, shape index: {}]
  %s3 = inlined_call_operand.vmem [shape: f32[16,256], index: 3, kind: input, shape index: {}]
  %s4 = inlined_call_operand.vmem [shape: f32[1,256], index: 4, kind: input, shape index: {}]
  %s5 = inlined_call_operand.vmem [shape: f32[2,16,256], index: 5, kind: output, shape index: {}]
  %s6 = sld [smem:[#allocation0]]
  $region61: #{a2dpe_forward.1} parent=0
    _
  %s8 = ssub.s32 1, %s6
  %s9 = scalar_select 0, %s8, %s6
  $region1: #{a2dpe_forward.1} parent=0
    #allocation2 [shape = 'u8[512]{0}', space=smem, size = 0x200, scoped, tag = 'input window, operand 0, single buffered']
    #allocation3 [shape = 's32[2]{0}', space=sflag, size = 0x8, scoped, tag = 'scoped memory for a2dpe_forward.1']
    #allocation4 [shape = 'u8[512]{0}', space=smem, size = 0x200, scoped, tag = 'input window, operand 1, single buffered']
    #allocation5 [shape = 's32[1]{0}', space=sflag, size = 0x4, scoped, tag = 'scoped memory for a2dpe_forward.1']
    %10 = vsyncpa [#allocation3], 0
    %11 = vsyncpa [#allocation5], 0
    loop: start=0, step=1, limit=4
    $region2: #{a2dpe_forward.1} parent=1 // loop_pre_header
      _
    $region3: #{a2dpe_forward.1} parent=1 // loop_header
      %s13 = sphi 0, %s17
      %p14 = scmp.ge.s32.totalorder %s13, 4
      %s21 = sphi 0, %s21
      %s23 = sphi 0, %s21
      %s24 = sphi 0, %s23
      %s38 = sphi 0, %s24
      %s42 = sphi 0, %s42
      %s44 = sphi 0, %s42
      %s45 = sphi 0, %s44
      %s59 = sphi 0, %s45
      %s65 = sphi 0, %s67
      %s68 = sphi 0, %s65
      %s69 = sphi 0, %s68
      %s85 = sphi 0, %s69
      %s89 = sphi 0, %s89
      %s91 = sphi 0, %s89
      %s92 = sphi 0, %s91
      %s106 = sphi 0, %s92
      %s110 = sphi 0, %s110
      %s112 = sphi 0, %s110
      %s113 = sphi 0, %s112
      %s127 = sphi 0, %s113
      %s133 = sphi 0, %s135
      %s136 = sphi 0, %s133
      %s137 = sphi 0, %s136
      %s153 = sphi 0, %s137
    $region4: #{a2dpe_forward.1} parent=1 // loop_header_branch
      %16 = sbr.rel (%p14) target = $region8
    $region5: #{a2dpe_forward.1} parent=1 // loop_body
      %s18 = ssub.s32 %s13, 1
      %s19 = ssub.s32 %s13, 2
      %s20 = sadd.s32 %s13, 1
      %s22 = sadd.s32 %s21, 1
      %p25 = scmp.eq.s32.totalorder %s13, 1
      %p26 = scmp.ne.s32.totalorder %s21, %s23
      %p27 = scmp.eq.s32.totalorder %s13, 0
      %p28 = por %p26, %p27
      %p29 = scmp.ne.s32.totalorder %s21, %s23
      %p30 = scmp.eq.s32.totalorder %s18, 1
      %p31 = por %p29, %p30
      %p32 = scmp.ne.s32.totalorder %s23, %s24
      %p33 = scmp.eq.s32.totalorder %s18, 0
      %p34 = por %p32, %p33
      %p35 = scmp.ne.s32.totalorder %s23, %s24
      %p36 = scmp.eq.s32.totalorder %s19, 1
      %p37 = por %p35, %p36
      %p39 = scmp.ne.s32.totalorder %s24, %s38
      %p40 = scmp.eq.s32.totalorder %s19, 0
      %p41 = por %p39, %p40
      %s43 = sadd.s32 %s42, 1
      %p46 = scmp.eq.s32.totalorder %s13, 1
      %p47 = scmp.ne.s32.totalorder %s42, %s44
      %p48 = scmp.eq.s32.totalorder %s13, 0
      %p49 = por %p47, %p48
      %p50 = scmp.ne.s32.totalorder %s42, %s44
      %p51 = scmp.eq.s32.totalorder %s18, 1
      %p52 = por %p50, %p51
      %p53 = scmp.ne.s32.totalorder %s44, %s45
      %p54 = scmp.eq.s32.totalorder %s18, 0
      %p55 = por %p53, %p54
      %p56 = scmp.ne.s32.totalorder %s44, %s45
      %p57 = scmp.eq.s32.totalorder %s19, 1
      %p58 = por %p56, %p57
      %p60 = scmp.ne.s32.totalorder %s45, %s59
      %p61 = scmp.eq.s32.totalorder %s19, 0
      %p62 = por %p60, %p61
      %s63 = ssub.s32 %s13, %s20
      %p64 = scmp.eq.s32.totalorder %s63, 0
      %s66 = sadd.s32 %s65, 1
      %s67 = scalar_select %p64, %s65, %s66
      %p70 = pneg %p64
      %p71 = scmp.eq.s32.totalorder %s13, 1
      %p72 = por %p70, %p71
      %p73 = scmp.ne.s32.totalorder %s65, %s68
      %p74 = scmp.eq.s32.totalorder %s13, 0
      %p75 = por %p73, %p74
      %p76 = scmp.ne.s32.totalorder %s65, %s68
      %p77 = scmp.eq.s32.totalorder %s18, 1
      %p78 = por %p76, %p77
      %p79 = scmp.ne.s32.totalorder %s68, %s69
      %p80 = scmp.eq.s32.totalorder %s18, 0
      %p81 = por %p79, %p80
      %p82 = scmp.ne.s32.totalorder %s68, %s69
      %p83 = scmp.eq.s32.totalorder %s19, 1
      %p84 = por %p82, %p83
      %p86 = scmp.ne.s32.totalorder %s69, %s85
      %p87 = scmp.eq.s32.totalorder %s19, 0
      %p88 = por %p86, %p87
      %s90 = sadd.s32 %s89, 1
      %p93 = scmp.eq.s32.totalorder %s13, 1
      %p94 = scmp.ne.s32.totalorder %s89, %s91
      %p95 = scmp.eq.s32.totalorder %s13, 0
      %p96 = por %p94, %p95
      %p97 = scmp.ne.s32.totalorder %s89, %s91
      %p98 = scmp.eq.s32.totalorder %s18, 1
      %p99 = por %p97, %p98
      %p100 = scmp.ne.s32.totalorder %s91, %s92
      %p101 = scmp.eq.s32.totalorder %s18, 0
      %p102 = por %p100, %p101
      %p103 = scmp.ne.s32.totalorder %s91, %s92
      %p104 = scmp.eq.s32.totalorder %s19, 1
      %p105 = por %p103, %p104
      %p107 = scmp.ne.s32.totalorder %s92, %s106
      %p108 = scmp.eq.s32.totalorder %s19, 0
      %p109 = por %p107, %p108
      %s111 = sadd.s32 %s110, 1
      %p114 = scmp.eq.s32.totalorder %s13, 1
      %p115 = scmp.ne.s32.totalorder %s110, %s112
      %p116 = scmp.eq.s32.totalorder %s13, 0
      %p117 = por %p115, %p116
      %p118 = scmp.ne.s32.totalorder %s110, %s112
      %p119 = scmp.eq.s32.totalorder %s18, 1
      %p120 = por %p118, %p119
      %p121 = scmp.ne.s32.totalorder %s112, %s113
      %p122 = scmp.eq.s32.totalorder %s18, 0
      %p123 = por %p121, %p122
      %p124 = scmp.ne.s32.totalorder %s112, %s113
      %p125 = scmp.eq.s32.totalorder %s19, 1
      %p126 = por %p124, %p125
      %p128 = scmp.ne.s32.totalorder %s113, %s127
      %p129 = scmp.eq.s32.totalorder %s19, 0
      %p130 = por %p128, %p129
      %s131 = ssub.s32 %s13, %s20
      %p132 = scmp.eq.s32.totalorder %s131, 0
      %s134 = sadd.s32 %s133, 1
      %s135 = scalar_select %p132, %s133, %s134
      %p138 = pneg %p132
      %p139 = scmp.eq.s32.totalorder %s13, 1
      %p140 = por %p138, %p139
      %p141 = scmp.ne.s32.totalorder %s133, %s136
      %p142 = scmp.eq.s32.totalorder %s13, 0
      %p143 = por %p141, %p142
      %p144 = scmp.ne.s32.totalorder %s133, %s136
      %p145 = scmp.eq.s32.totalorder %s18, 1
      %p146 = por %p144, %p145
      %p147 = scmp.ne.s32.totalorder %s136, %s137
      %p148 = scmp.eq.s32.totalorder %s18, 0
      %p149 = por %p147, %p148
      %p150 = scmp.ne.s32.totalorder %s136, %s137
      %p151 = scmp.eq.s32.totalorder %s19, 1
      %p152 = por %p150, %p151
      %p154 = scmp.ne.s32.totalorder %s137, %s153
      %p155 = scmp.eq.s32.totalorder %s19, 0
      %p156 = por %p154, %p155
      %p157 = scmp.le.s32.totalorder 1, %s13
      %p158 = scmp.lt.s32.totalorder %s13, 3
      %p159 = pnand %p157, %p158
      %p160 = pneg %p159
      // Predicated region
      $region9: #{a2dpe_forward.1} parent=5 // pred_check
        _
      $region10: #{a2dpe_forward.1} parent=5 // pred_check_branch
        %162 = sbr.rel (%p159) target = $region12
      $region11: #{a2dpe_forward.1} parent=5 // pred_region
        %s163 = ssub.s32 %s13, 1
        // Predicated region
        $region13: #{a2dpe_forward.1} parent=11 // pred_check
          %p164 = pneg %p34
        $region14: #{a2dpe_forward.1} parent=11 // pred_check_branch
          %166 = sbr.rel (%p164) target = $region16
        $region15: #{a2dpe_forward.1} parent=11 // pred_region
          %s168 = ssub.s32 16, 16
          %169 = vsyncadd [#allocation3], %s168
          %s171 = sshll.u32 %s0, 4
          %s172 = int_to_ptr.vmem [resolvable:$true] %s171
          %174 = dma.vmem_to_smem %s172, 16, [#allocation2], [#allocation3]
        $region16: #{a2dpe_forward.1} parent=11 // pred_fallthru
          _
        // Predicated region
        $region17: #{a2dpe_forward.1} parent=11 // pred_check
          %p175 = pneg %p55
        $region18: #{a2dpe_forward.1} parent=11 // pred_check_branch
          %177 = sbr.rel (%p175) target = $region20
        $region19: #{a2dpe_forward.1} parent=11 // pred_region
          %s179 = ssub.s32 16, 16
          %180 = vsyncadd [#allocation5], %s179
          %s182 = sshll.u32 %s1, 4
          %s183 = int_to_ptr.vmem [resolvable:$true] %s182
          %185 = dma.vmem_to_smem %s183, 16, [#allocation4], [#allocation5]
        $region20: #{a2dpe_forward.1} parent=11 // pred_fallthru
          _
        // Predicated region
        $region21: #{a2dpe_forward.1} parent=11 // pred_check
          %p186 = pneg %p102
        $region22: #{a2dpe_forward.1} parent=11 // pred_check_branch
          %188 = sbr.rel (%p186) target = $region24
        $region23: #{a2dpe_forward.1} parent=11 // pred_region
          _
        $region24: #{a2dpe_forward.1} parent=11 // pred_fallthru
          _
        // Predicated region
        $region25: #{a2dpe_forward.1} parent=11 // pred_check
          %p189 = pneg %p123
        $region26: #{a2dpe_forward.1} parent=11 // pred_check_branch
          %191 = sbr.rel (%p189) target = $region28
        $region27: #{a2dpe_forward.1} parent=11 // pred_region
          _
        $region28: #{a2dpe_forward.1} parent=11 // pred_fallthru
          _
      $region12: #{a2dpe_forward.1} parent=5 // pred_fallthru
        _
      %p192 = scmp.lt.s32.totalorder %s13, 2
      // Predicated region
      $region29: #{a2dpe_forward.1} parent=5 // pred_check
        %p193 = pneg %p192
      $region30: #{a2dpe_forward.1} parent=5 // pred_check_branch
        %195 = sbr.rel (%p193) target = $region32
      $region31: #{a2dpe_forward.1} parent=5 // pred_region
        // Predicated region
        $region33: #{a2dpe_forward.1} parent=31 // pred_check
          %p196 = pneg %p75
        $region34: #{a2dpe_forward.1} parent=31 // pred_check_branch
          %198 = sbr.rel (%p196) target = $region36
        $region35: #{a2dpe_forward.1} parent=31 // pred_region
          %p199 = scmp.lt.s32.totalorder %s13, 1
          %s200 = scalar_select %p199, %s13, 1
          %s201 = smul.addr %s200, 4
          %s202 = smul.addr %s201, 8
          %s203 = scalar_lea.vmem %s2, %s202
        $region36: #{a2dpe_forward.1} parent=31 // pred_fallthru
          _
      $region32: #{a2dpe_forward.1} parent=5 // pred_fallthru
        _
      %p204 = scmp.le.s32.totalorder 1, %s13
      %p205 = scmp.lt.s32.totalorder %s13, 3
      %p206 = pnand %p204, %p205
      %p207 = pneg %p206
      // Predicated region
      $region37: #{a2dpe_forward.1} parent=5 // pred_check
        _
      $region38: #{a2dpe_forward.1} parent=5 // pred_check_branch
        %209 = sbr.rel (%p206) target = $region40
      $region39: #{a2dpe_forward.1} parent=5 // pred_region
        %s210 = ssub.s32 %s13, 1
        // Predicated region
        $region41: #{a2dpe_forward.1} parent=39 // pred_check
          %p211 = pneg %p34
        $region42: #{a2dpe_forward.1} parent=39 // pred_check_branch
          %213 = sbr.rel (%p211) target = $region44
        $region43: #{a2dpe_forward.1} parent=39 // pred_region
          %214 = dma.done [#allocation3], 16
        $region44: #{a2dpe_forward.1} parent=39 // pred_fallthru
          _
        // Predicated region
        $region45: #{a2dpe_forward.1} parent=39 // pred_check
          %p215 = pneg %p55
        $region46: #{a2dpe_forward.1} parent=39 // pred_check_branch
          %217 = sbr.rel (%p215) target = $region48
        $region47: #{a2dpe_forward.1} parent=39 // pred_region
          %218 = dma.done [#allocation5], 16
        $region48: #{a2dpe_forward.1} parent=39 // pred_fallthru
          _
        %219 = sfence
        %p220 = pneg %p34
        %p221 = pneg %p31
        %p222 = pneg %p55
        %p223 = pneg %p52
        %p224 = scmp.lt.s32.totalorder %s18, 1
        %s225 = scalar_select %p224, %s18, 1
        %s226 = smul.addr %s225, 4
        %s227 = smul.addr %s226, 8
        %s228 = scalar_lea.vmem %s2, %s227
        %p229 = pneg %p81
        %p230 = pneg %p78
        %p231 = pneg %p102
        %p232 = pneg %p99
        %p233 = pneg %p123
        %p234 = pneg %p120
        %p235 = pneg %p149
        %p236 = pneg %p146
        %p237 = scmp.lt.s32.totalorder %s18, 1
        %s238 = scalar_select %p237, %s18, 1
        %s239 = smul.addr %s238, 4
        %s240 = smul.addr %s239, 8
        %s241 = scalar_lea.vmem %s5, %s240
        %p242 = scmp.lt.s32.totalorder %s18, 1
        %s243 = scalar_select %p242, %s18, 1
        %s244 = smul.addr %s243, 4
        %s245 = smul.addr %s244, 8
        %s246 = scalar_lea.vmem %s2, %s245
        %p247 = scmp.lt.s32.totalorder %s18, 1
        %s248 = scalar_select %p247, %s18, 1
        %s249 = smul.addr %s248, 4
        %s250 = smul.addr %s249, 8
        %s251 = scalar_lea.vmem %s5, %s250
        %v252 = vld [vmem:[%s246] sm:$0xff]
        %v253 = vld [vmem:[%s246 + $0x8] sm:$0xff]
        %v254 = vld [vmem:[%s246 + $0x10] sm:$0xff]
        %v255 = vld [vmem:[%s246 + $0x18] sm:$0xff]
        %v256 = vadd.f32 %v252, %v253
        %v257 = vadd.f32 %v256, %v254
        %v258 = vadd.f32 %v257, %v255
        %259 = vadd.xlane.f32.xlu0 %v258
        %v260 = vpop.xlane.xlu0 %259
        %v261 = vrot.slane %v260, 4
        %v262 = vadd.f32 %v260, %v261
        %v263 = vrot.slane %v262, 2
        %v264 = vadd.f32 %v262, %v263
        %v265 = vrot.slane %v264, 1
        %v266 = vadd.f32 %v264, %v265
        %s267 = vtos %v266
        %v268 = vrcp.pop 4096.0
        %s269 = vtos %v268
        %s270 = smul.f32 %s267, %s269
        %s271 = sld [smem:[#allocation2]]
        %s272 = smul.f32 %s271, %s270
        %s273 = sld [smem:[#allocation2 + $0x1]]
        %s274 = sadd.f32 %s272, %s273
        %s275 = smax.f32 %s274, 0.0
        %s276 = sld [smem:[#allocation2 + $0x2]]
        %s277 = smul.f32 %s276, %s275
        %s278 = sld [smem:[#allocation2 + $0x3]]
        %s279 = sadd.f32 %s277, %s278
        %s280 = sxor.u32 %s279, 2147483648
        %v281 = vstv %s280
        %v282 = vmul.f32 %v281, 1.442695
        %v283 = vpow.pop %v282
        %s284 = vtos %v283
        %s285 = sadd.f32 %s284, 1.0
        %v286 = vstv %s285
        %v287 = vrcp.pop %v286
        %s288 = vtos %v287
        %s289 = sld [smem:[#allocation4]]
        %s290 = smul.f32 %s289, %s270
        %s291 = sld [smem:[#allocation4 + $0x1]]
        %s292 = sadd.f32 %s290, %s291
        %s293 = smax.f32 %s292, 0.0
        %s294 = sld [smem:[#allocation4 + $0x2]]
        %s295 = smul.f32 %s294, %s293
        %s296 = sld [smem:[#allocation4 + $0x3]]
        %s297 = sadd.f32 %s295, %s296
        %s298 = sxor.u32 %s297, 2147483648
        %v299 = vstv %s298
        %v300 = vmul.f32 %v299, 1.442695
        %v301 = vpow.pop %v300
        %s302 = vtos %v301
        %s303 = sadd.f32 %s302, 1.0
        %v304 = vstv %s303
        %v305 = vrcp.pop %v304
        %s306 = vtos %v305
        %v307 = vld [vmem:[%s3] sm:$0xff]
        %v308 = vld [vmem:[%s3 + $0x8] sm:$0xff]
        %v309 = vld [vmem:[%s3 + $0x10] sm:$0xff]
        %v310 = vld [vmem:[%s3 + $0x18] sm:$0xff]
        %v311 = vstv %s288
        %v312 = vmul.f32 %v311, %v307
        %v313 = vmul.f32 %v311, %v308
        %v314 = vmul.f32 %v311, %v309
        %v315 = vmul.f32 %v311, %v310
        %v316 = vld [vmem:[%s4] sm:$0x3]
        %v317 = vstv %s306
        %v318 = vmul.f32 %v317, %v316
        %v320 = vlaneseq
        %v321 = vshrl.u32 %v320, 7
        %v322 = vsub.s32 0, %v321
        %v323 = vrot.slane %v318, %v322
        %v324 = vlaneseq
        %v325 = vshrl.u32 %v324, 7
        %v326 = vsub.s32 1, %v325
        %v327 = vrot.slane %v318, %v326
        %v330 = vadd.f32 %v312, %v323
        %v331 = vadd.f32 %v313, %v327
        %v332 = vadd.f32 %v314, %v323
        %v333 = vadd.f32 %v315, %v327
        %v334 = vadd.f32 %v252, %v330
        %v335 = vadd.f32 %v253, %v331
        %v336 = vadd.f32 %v254, %v332
        %v337 = vadd.f32 %v255, %v333
        %338 = vst [vmem:[%s251] sm:$0xff] %v334
        %339 = vst [vmem:[%s251 + $0x8] sm:$0xff] %v335
        %340 = vst [vmem:[%s251 + $0x10] sm:$0xff] %v336
        %341 = vst [vmem:[%s251 + $0x18] sm:$0xff] %v337
        %p342 = scmp.lt.s32.totalorder %s18, 1
        %s343 = scalar_select %p342, %s18, 1
        %s344 = smul.addr %s343, 4
        %s345 = smul.addr %s344, 8
        %s346 = scalar_lea.vmem %s5, %s345
        // Predicated region
        $region49: #{a2dpe_forward.1} parent=39 // pred_check
          %p347 = pneg %p146
        $region50: #{a2dpe_forward.1} parent=39 // pred_check_branch
          %349 = sbr.rel (%p347) target = $region52
        $region51: #{a2dpe_forward.1} parent=39 // pred_region
          _
        $region52: #{a2dpe_forward.1} parent=39 // pred_fallthru
          _
      $region40: #{a2dpe_forward.1} parent=5 // pred_fallthru
        _
      %p350 = scmp.le.s32.totalorder 2, %s13
      // Predicated region
      $region53: #{a2dpe_forward.1} parent=5 // pred_check
        %p351 = pneg %p350
      $region54: #{a2dpe_forward.1} parent=5 // pred_check_branch
        %353 = sbr.rel (%p351) target = $region56
      $region55: #{a2dpe_forward.1} parent=5 // pred_region
        %s354 = ssub.s32 %s13, 2
        // Predicated region
        $region57: #{a2dpe_forward.1} parent=55 // pred_check
          %p355 = pneg %p152
        $region58: #{a2dpe_forward.1} parent=55 // pred_check_branch
          %357 = sbr.rel (%p355) target = $region60
        $region59: #{a2dpe_forward.1} parent=55 // pred_region
          %p358 = scmp.lt.s32.totalorder %s19, 1
          %s359 = scalar_select %p358, %s19, 1
          %s360 = smul.addr %s359, 4
          %s361 = smul.addr %s360, 8
          %s362 = scalar_lea.vmem %s5, %s361
        $region60: #{a2dpe_forward.1} parent=55 // pred_fallthru
          _
      $region56: #{a2dpe_forward.1} parent=5 // pred_fallthru
        _
    $region6: #{a2dpe_forward.1} parent=1 // loop_footer
      %s17 = sadd.s32 1, %s13
    $region7: #{a2dpe_forward.1} parent=1 // loop_footer_branch
      %12 = sbr.rel target = $region3
    $region8: #{a2dpe_forward.1} parent=1 // loop_exit
      _
    %363 = vsyncpa [#allocation3], 1
    %s364 = scalar_lea.sflag [#allocation3], 1
    %365 = vsyncpa %s364, 1
    %366 = vsyncpa [#allocation5], 1

</llo_original>
